<compile_context>
chip_gen: v6e
topology: v6e:2x2x1
jax: 0.10.0
libtpu: 0.0.40
codegen_flags: <defaults>
</compile_context>

<pallas_src>
import functools

import jax
import jax.numpy as jnp
from jax import lax
from jax.experimental import pallas as pl
from jax.experimental.pallas import tpu as pltpu

_BF16 = jnp.bfloat16
_NEG_BIG = 1e30


def _celu(v):
    # CELU(alpha=1): max(0, x) + min(0, exp(x) - 1)
    return jnp.maximum(v, 0.0) + (jnp.exp(jnp.minimum(v, 0.0)) - 1.0)


# ----------------------------------------------------------------------------- kernels


def pre_kernel(x_ref, ymask_ref, w1_ref, b1_ref, w2_ref, b2_ref, gw1_ref, out_ref):
    """Per-row-tile: class-conditional Linear+ReLU, then GAT-1 input projection."""
    x = x_ref[...]                                  # [T, D] bf16
    ym = ymask_ref[...]                             # [T, 1] f32
    h_gene = jnp.maximum(
        jnp.dot(x, w1_ref[...], preferred_element_type=jnp.float32) + b1_ref[...], 0.0)
    h_cell = jnp.maximum(
        jnp.dot(x, w2_ref[...], preferred_element_type=jnp.float32) + b2_ref[...], 0.0)
    # TODO(synk): for heavily class-imbalanced graphs, partition nodes by y in the
    # wrapper so each row runs only its own DxD linear instead of both branches.
    h = jnp.where(ym > 0.0, h_gene, h_cell)         # [T, D] f32
    out_ref[...] = jnp.dot(h.astype(_BF16), gw1_ref[...],
                           preferred_element_type=jnp.float32).astype(out_ref.dtype)


def _gat_body(hp_ref, adj_ref, mb_ref, asrc_ref, adst_ref, b_ref, wnext_ref, out_ref):
    """One dst-row tile of a 1-head GATConv + CELU (+ optional next-layer projection)."""
    tile = out_ref.shape[0]
    row0 = pl.multiple_of(pl.program_id(0) * tile, 8)

    hp = hp_ref[...]                                # [N, D] bf16 (resident across tiles)
    hp_dst = hp_ref[pl.ds(row0, tile), :]           # [T, D] bf16

    # Attention logits. Two tiny matvecs (kept separate to avoid a 1-wide transpose);
    # both are negligible next to the [T,N]x[N,D] aggregation matmul.
    s_dst = jnp.dot(hp_dst, adst_ref[...],
                    preferred_element_type=jnp.float32)                       # [T, 1]
    s_src = lax.dot_general(asrc_ref[...], hp,
                            dimension_numbers=(((1,), (1,)), ((), ())),
                            preferred_element_type=jnp.float32)               # [1, N]
    scores = s_dst + s_src                                                    # [T, N]

    # LeakyReLU(0.2) + additive edge mask (0 / -1e30) -- no selects on the N^2 path.
    e = jnp.maximum(scores, 0.2 * scores) + mb_ref[...]
    m = jnp.max(e, axis=-1, keepdims=True)
    # Multiplicative 0/1 mask keeps isolated dst rows exactly at "bias only".
    p = jnp.exp(e - m) * adj_ref[...].astype(jnp.float32)
    denom = jnp.sum(p, axis=-1, keepdims=True)
    p = p * pl.reciprocal(jnp.maximum(denom, 1e-16), approx=True)

    agg = jnp.dot(p.astype(_BF16), hp, preferred_element_type=jnp.float32) + b_ref[...]
    g = _celu(agg)                                                            # [T, D] f32
    # dropout: training=False -> identity
    # TODO(synk): training-mode dropout (pltpu.prng_random_bits mask) not emitted here.
    if wnext_ref is None:
        out_ref[...] = g.astype(out_ref.dtype)
    else:
        out_ref[...] = jnp.dot(g.astype(_BF16), wnext_ref[...],
                               preferred_element_type=jnp.float32).astype(out_ref.dtype)


def gat_kernel_fused(hp_ref, adj_ref, mb_ref, asrc_ref, adst_ref, b_ref, wnext_ref, out_ref):
    _gat_body(hp_ref, adj_ref, mb_ref, asrc_ref, adst_ref, b_ref, wnext_ref, out_ref)


def gat_kernel_last(hp_ref, adj_ref, mb_ref, asrc_ref, adst_ref, b_ref, out_ref):
    _gat_body(hp_ref, adj_ref, mb_ref, asrc_ref, adst_ref, b_ref, None, out_ref)


# ----------------------------------------------------------------------------- wrapper


def _pick_tile(n, target=512):
    """Largest row tile <= target that is a multiple of 8 and divides n (v6e-friendly;
    halve `target` for v7x's 64 MiB/TC VMEM)."""
    if n <= target:
        return n
    for t in range(min(target, n), 7, -8):
        if n % t == 0 and t % 8 == 0:
            return t
    return n


def encoder_forward(x, edge_index, y, params, *, tile_rows=None):
    """x: [N, D] f32, edge_index: [2, E] i32 (row0=src, row1=dst), y: [N] bool."""
    N, D = x.shape
    src, dst = edge_index[0], edge_index[1]

    # TODO(synk): for large N, pass CSR offsets via PrefetchScalarGridSpec instead of
    # materializing the dense [N, N] adjacency.
    adj = jnp.zeros((N, N), jnp.float32).at[dst, src].set(1.0)     # adj[dst, src]
    mask_bias = (adj - 1.0) * _NEG_BIG                              # 0 on edges, -1e30 else (f32)
    adj_b = adj.astype(_BF16)                                       # 0/1 multiplicative mask
    ymask = y.astype(jnp.float32)[:, None]                          # [N, 1]
    x_b = x.astype(_BF16)

    t = _pick_tile(N) if tile_rows is None else tile_rows
    grid = (N // t,)
    cp = pltpu.CompilerParams(
        dimension_semantics=("parallel",),          # shards dst tiles across v7x's 2 TCs
        vmem_limit_bytes=64 * 1024 * 1024,
    )
    row_spec = pl.BlockSpec((t, D), lambda i: (i, 0))
    full_dd = pl.BlockSpec((D, D), lambda i: (0, 0))
    row_bias = pl.BlockSpec((1, D), lambda i: (0, 0))

    # --- call 1: per-class linear + relu + select, fused with GAT-1 input projection ---
    hp1 = pl.pallas_call(
        pre_kernel,
        out_shape=jax.ShapeDtypeStruct((N, D), _BF16),
        grid=grid,
        in_specs=[
            row_spec,                                   # x tile
            pl.BlockSpec((t, 1), lambda i: (i, 0)),     # y mask tile
            full_dd, row_bias,                          # W1, b1
            full_dd, row_bias,                          # W2, b2
            full_dd,                                    # Wg1
        ],
        out_specs=row_spec,
        compiler_params=cp,
    )(x_b, ymask, params["w1_t"], params["b1"], params["w2_t"], params["b2"],
      params["gw1_t"])

    def gat_call(hp, a_src, a_dst, gb, w_next, out_dtype):
        ins = [hp, adj_b, mask_bias, a_src, a_dst, gb]
        in_specs = [
            pl.BlockSpec((N, D), lambda i: (0, 0)),     # hp: full, resident across dst tiles
            pl.BlockSpec((t, N), lambda i: (i, 0)),     # adjacency dst-row tile (bf16)
            pl.BlockSpec((t, N), lambda i: (i, 0)),     # additive mask bias tile (f32)
            pl.BlockSpec((1, D), lambda i: (0, 0)),     # a_src
            pl.BlockSpec((D, 1), lambda i: (0, 0)),     # a_dst
            row_bias,                                   # GAT bias
        ]
        if w_next is not None:
            ins.append(w_next)
            in_specs.append(full_dd)
            kernel = gat_kernel_fused
        else:
            kernel = gat_kernel_last
        return pl.pallas_call(
            kernel,
            out_shape=jax.ShapeDtypeStruct((N, D), out_dtype),
            grid=grid,
            in_specs=in_specs,
            out_specs=pl.BlockSpec((t, D), lambda i: (i, 0)),
            compiler_params=cp,
        )(*ins)

    # --- call 2: GAT-1 + CELU + (eval dropout = identity) + GAT-2 input projection ---
    hp2 = gat_call(hp1, params["a_src1"], params["a_dst1"], params["gb1"],
                   params["gw2_t"], _BF16)
    # --- call 3: GAT-2 + CELU ---
    out = gat_call(hp2, params["a_src2"], params["a_dst2"], params["gb2"],
                   None, jnp.float32)
    return out


# ----------------------------------------------------------------------------- reference


def _reference_forward(x, edge_index, y, params):
    """Pure-JAX f32 reference (weights upcast from their stored bf16 values)."""
    f32 = lambda a: a.astype(jnp.float32)
    N, D = x.shape
    src, dst = edge_index[0], edge_index[1]
    adj = jnp.zeros((N, N), jnp.float32).at[dst, src].set(1.0)

    h_gene = jax.nn.relu(x @ f32(params["w1_t"]) + params["b1"])
    h_cell = jax.nn.relu(x @ f32(params["w2_t"]) + params["b2"])
    h = jnp.where(y[:, None], h_gene, h_cell)

    def gat(feat, w_t, a_src, a_dst, bias):
        hp = feat @ f32(w_t)
        s_dst = hp @ f32(a_dst)                        # [N, 1]
        s_src = (hp @ f32(a_src)[0][:, None]).T        # [1, N]
        scores = s_dst + s_src
        e = jnp.where(scores > 0, scores, 0.2 * scores)
        e = jnp.where(adj > 0, e, -_NEG_BIG)
        m = jnp.max(e, axis=-1, keepdims=True)
        p = jnp.where(adj > 0, jnp.exp(e - m), 0.0)
        p = p / jnp.maximum(p.sum(-1, keepdims=True), 1e-16)
        return p @ hp + bias

    celu = lambda v: jnp.maximum(v, 0.0) + (jnp.exp(jnp.minimum(v, 0.0)) - 1.0)
    h1 = celu(gat(h, params["gw1_t"], params["a_src1"], params["a_dst1"], params["gb1"]))
    h2 = celu(gat(h1, params["gw2_t"], params["a_src2"], params["a_dst2"], params["gb2"]))
    return h2


def init_params(key, dim):
    ks = jax.random.split(key, 10)
    s = 0.1
    w = lambda k, shape: (jax.random.normal(k, shape, jnp.float32) * s).astype(_BF16)
    return {
        # Linear / GAT weight matrices stored pre-transposed [in, out] in bf16.
        "w1_t": w(ks[0], (dim, dim)),
        "b1":   jax.random.normal(ks[1], (1, dim), jnp.float32) * s,
        "w2_t": w(ks[2], (dim, dim)),
        "b2":   jax.random.normal(ks[3], (1, dim), jnp.float32) * s,
        # GATConv 1
        "gw1_t":  w(ks[4], (dim, dim)),
        "a_src1": w(ks[5], (1, dim)),
        "a_dst1": w(ks[6], (dim, 1)),
        "gb1":    jnp.zeros((1, dim), jnp.float32),
        # GATConv 2
        "gw2_t":  w(ks[7], (dim, dim)),
        "a_src2": w(ks[8], (1, dim)),
        "a_dst2": w(ks[9], (dim, 1)),
        "gb2":    jnp.zeros((1, dim), jnp.float32),
    }


if __name__ == "__main__":
    DIM = 128   # module default dim
    N = 8       # small graph

    key = jax.random.PRNGKey(0)
    k_x, k_p = jax.random.split(key)

    x = jax.random.normal(k_x, (N, DIM), jnp.float32)
    y = (jnp.arange(N) % 2 == 0)                      # alternate gene / cell nodes
    # ring graph (every node has one incoming edge) + a few extra edges
    src = jnp.array([0, 1, 2, 3, 4, 5, 6, 7, 0, 3, 5], jnp.int32)
    dst = jnp.array([1, 2, 3, 4, 5, 6, 7, 0, 4, 7, 1], jnp.int32)
    edge_index = jnp.stack([src, dst])

    params = init_params(k_p, DIM)

    out = jax.block_until_ready(encoder_forward(x, edge_index, y, params))
    ref = _reference_forward(x, edge_index, y, params)

    assert out.shape == (N, DIM)
    assert jnp.all(jnp.isfinite(out))
    # bf16 MXU operands + approx reciprocal introduce ~1% relative error vs the f32 reference
    assert jnp.allclose(out, ref, rtol=2e-2, atol=2e-2), "mismatch vs reference"

    print("KERNEL_OK")
</pallas_src>

<mosaic_0001>
module attributes {stable_mosaic.version = 11 : i64} {
  func.func @pre_kernel(%arg0: i32, %arg1: memref<8x128xbf16, #tpu.memory_space<vmem>>, %arg2: memref<8x1xf32, #tpu.memory_space<vmem>>, %arg3: memref<128x128xbf16, #tpu.memory_space<vmem>>, %arg4: memref<1x128xf32, #tpu.memory_space<vmem>>, %arg5: memref<128x128xbf16, #tpu.memory_space<vmem>>, %arg6: memref<1x128xf32, #tpu.memory_space<vmem>>, %arg7: memref<128x128xbf16, #tpu.memory_space<vmem>>, %arg8: memref<8x128xbf16, #tpu.memory_space<vmem>>) attributes {dimension_semantics = [#tpu.dimension_semantics<parallel>], iteration_bounds = array<i64: 1>, scalar_prefetch = 0 : i64, scratch_operands = 0 : i64, tpu.core_type = #tpu.core_type<tc>, window_params = [{transform_indices = @transform_0, window_bounds = array<i64: 8, 128>}, {transform_indices = @transform_1, window_bounds = array<i64: 8, 1>}, {pipeline_mode = #tpu.pipeline_mode<synchronous>, transform_indices = @transform_2, window_bounds = array<i64: 128, 128>}, {pipeline_mode = #tpu.pipeline_mode<synchronous>, transform_indices = @transform_3, window_bounds = array<i64: 1, 128>}, {pipeline_mode = #tpu.pipeline_mode<synchronous>, transform_indices = @transform_4, window_bounds = array<i64: 128, 128>}, {pipeline_mode = #tpu.pipeline_mode<synchronous>, transform_indices = @transform_5, window_bounds = array<i64: 1, 128>}, {pipeline_mode = #tpu.pipeline_mode<synchronous>, transform_indices = @transform_6, window_bounds = array<i64: 128, 128>}, {transform_indices = @transform_7, window_bounds = array<i64: 8, 128>}]} {
    %c0 = arith.constant 0 : index
    %c0_0 = arith.constant 0 : index
    %0 = vector.load %arg1[%c0, %c0_0] : memref<8x128xbf16, #tpu.memory_space<vmem>>, vector<8x128xbf16>
    %c0_1 = arith.constant 0 : index
    %c0_2 = arith.constant 0 : index
    %1 = vector.load %arg2[%c0_1, %c0_2] : memref<8x1xf32, #tpu.memory_space<vmem>>, vector<8x1xf32>
    %c0_3 = arith.constant 0 : index
    %c0_4 = arith.constant 0 : index
    %2 = vector.load %arg3[%c0_3, %c0_4] : memref<128x128xbf16, #tpu.memory_space<vmem>>, vector<128x128xbf16>
    %cst = arith.constant dense<0.000000e+00> : vector<8x128xf32>
    %3 = tpu.matmul %0, %2, %cst {dimension_numbers = #tpu.dot_dimension_numbers<[1], [0], [0], [1], [0, 0, 1, 1], [], []>} : vector<8x128xbf16>, vector<128x128xbf16>, vector<8x128xf32> -> vector<8x128xf32>
    %c0_5 = arith.constant 0 : index
    %c0_6 = arith.constant 0 : index
    %4 = vector.load %arg4[%c0_5, %c0_6] : memref<1x128xf32, #tpu.memory_space<vmem>>, vector<1x128xf32>
    %5 = vector.broadcast %4 : vector<1x128xf32> to vector<8x128xf32>
    %6 = arith.addf %3, %5 : vector<8x128xf32>
    %cst_7 = arith.constant 0.000000e+00 : f32
    %7 = vector.broadcast %cst_7 : f32 to vector<8x128xf32>
    %8 = arith.maximumf %6, %7 : vector<8x128xf32>
    %c0_8 = arith.constant 0 : index
    %c0_9 = arith.constant 0 : index
    %9 = vector.load %arg5[%c0_8, %c0_9] : memref<128x128xbf16, #tpu.memory_space<vmem>>, vector<128x128xbf16>
    %cst_10 = arith.constant dense<0.000000e+00> : vector<8x128xf32>
    %10 = tpu.matmul %0, %9, %cst_10 {dimension_numbers = #tpu.dot_dimension_numbers<[1], [0], [0], [1], [0, 0, 1, 1], [], []>} : vector<8x128xbf16>, vector<128x128xbf16>, vector<8x128xf32> -> vector<8x128xf32>
    %c0_11 = arith.constant 0 : index
    %c0_12 = arith.constant 0 : index
    %11 = vector.load %arg6[%c0_11, %c0_12] : memref<1x128xf32, #tpu.memory_space<vmem>>, vector<1x128xf32>
    %12 = vector.broadcast %11 : vector<1x128xf32> to vector<8x128xf32>
    %13 = arith.addf %10, %12 : vector<8x128xf32>
    %cst_13 = arith.constant 0.000000e+00 : f32
    %14 = vector.broadcast %cst_13 : f32 to vector<8x128xf32>
    %15 = arith.maximumf %13, %14 : vector<8x128xf32>
    %cst_14 = arith.constant 0.000000e+00 : f32
    %16 = vector.broadcast %cst_14 : f32 to vector<8x1xf32>
    %17 = arith.cmpf ogt, %1, %16 : vector<8x1xf32>
    %18 = vector.shape_cast %17 : vector<8x1xi1> to vector<8x1xi1>
    %19 = vector.broadcast %18 : vector<8x1xi1> to vector<8x128xi1>
    %20 = arith.select %19, %8, %15 : vector<8x128xi1>, vector<8x128xf32>
    %21 = arith.truncf %20 : vector<8x128xf32> to vector<8x128xbf16>
    %c0_15 = arith.constant 0 : index
    %c0_16 = arith.constant 0 : index
    %22 = vector.load %arg7[%c0_15, %c0_16] : memref<128x128xbf16, #tpu.memory_space<vmem>>, vector<128x128xbf16>
    %cst_17 = arith.constant dense<0.000000e+00> : vector<8x128xf32>
    %23 = tpu.matmul %21, %22, %cst_17 {dimension_numbers = #tpu.dot_dimension_numbers<[1], [0], [0], [1], [0, 0, 1, 1], [], []>} : vector<8x128xbf16>, vector<128x128xbf16>, vector<8x128xf32> -> vector<8x128xf32>
    %24 = arith.truncf %23 : vector<8x128xf32> to vector<8x128xbf16>
    %c0_18 = arith.constant 0 : index
    %c0_19 = arith.constant 0 : index
    %25 = vector.load %arg8[%c0_18, %c0_19] : memref<8x128xbf16, #tpu.memory_space<vmem>>, vector<8x128xbf16>
    tpu.vector_store %arg8[%c0_18, %c0_19], %24 {strides = array<i32>} : memref<8x128xbf16, #tpu.memory_space<vmem>>, vector<8x128xbf16>,
    return
  }
  func.func @transform_0(%arg0: i32) -> (i32, i32) {
    %c0_i32 = arith.constant 0 : i32
    %c0_i32_0 = arith.constant 0 : i32
    return %arg0, %c0_i32 : i32, i32
  }
  func.func @transform_1(%arg0: i32) -> (i32, i32) {
    %c0_i32 = arith.constant 0 : i32
    %c0_i32_0 = arith.constant 0 : i32
    return %arg0, %c0_i32 : i32, i32
  }
  func.func @transform_2(%arg0: i32) -> (i32, i32) {
    %c0_i32 = arith.constant 0 : i32
    %c0_i32_0 = arith.constant 0 : i32
    %c0_i32_1 = arith.constant 0 : i32
    return %c0_i32, %c0_i32_0 : i32, i32
  }
  func.func @transform_3(%arg0: i32) -> (i32, i32) {
    %c0_i32 = arith.constant 0 : i32
    %c0_i32_0 = arith.constant 0 : i32
    %c0_i32_1 = arith.constant 0 : i32
    return %c0_i32, %c0_i32_0 : i32, i32
  }
  func.func @transform_4(%arg0: i32) -> (i32, i32) {
    %c0_i32 = arith.constant 0 : i32
    %c0_i32_0 = arith.constant 0 : i32
    %c0_i32_1 = arith.constant 0 : i32
    return %c0_i32, %c0_i32_0 : i32, i32
  }
  func.func @transform_5(%arg0: i32) -> (i32, i32) {
    %c0_i32 = arith.constant 0 : i32
    %c0_i32_0 = arith.constant 0 : i32
    %c0_i32_1 = arith.constant 0 : i32
    return %c0_i32, %c0_i32_0 : i32, i32
  }
  func.func @transform_6(%arg0: i32) -> (i32, i32) {
    %c0_i32 = arith.constant 0 : i32
    %c0_i32_0 = arith.constant 0 : i32
    %c0_i32_1 = arith.constant 0 : i32
    return %c0_i32, %c0_i32_0 : i32, i32
  }
  func.func @transform_7(%arg0: i32) -> (i32, i32) {
    %c0_i32 = arith.constant 0 : i32
    %c0_i32_0 = arith.constant 0 : i32
    return %arg0, %c0_i32 : i32, i32
  }
}

</mosaic_0001>

<llo_original>
// kernel: tpu_custom_call.1
$region0: #{tpu_custom_call.1}
  #allocation0 [shape = 'u32[]', space=smem, size = 0x4, offset = 0x4, fixed_abs, tag = 'smem constant byte address 0x4 - core index']
  #allocation1 [shape = 'u32[144,128]{1,0:T(1,128)}', space=vmem, size = 0x12000, scoped, tag = 'internal scratch']
  %s0 = inlined_call_operand.vmem [shape: bf16[8,128], index: 0, kind: input, shape index: {}]
  %s1 = inlined_call_operand.vmem [shape: f32[8,1], index: 1, kind: input, shape index: {}]
  %s2 = inlined_call_operand.hbm [shape: bf16[128,128], index: 2, kind: input, shape index: {}]
  %s3 = inlined_call_operand.vmem [shape: f32[1,128], index: 3, kind: input, shape index: {}]
  %s4 = inlined_call_operand.hbm [shape: bf16[128,128], index: 4, kind: input, shape index: {}]
  %s5 = inlined_call_operand.vmem [shape: f32[1,128], index: 5, kind: input, shape index: {}]
  %s6 = inlined_call_operand.hbm [shape: bf16[128,128], index: 6, kind: input, shape index: {}]
  %s7 = inlined_call_operand.hbm [shape: bf16[8,128], index: 7, kind: output, shape index: {}]
  %s8 = sld [smem:[#allocation0]]
  $region50: #{tpu_custom_call.1} parent=0
    _
  %s10 = ssub.s32 1, %s8
  %s11 = scalar_select 0, %s10, %s8
  $region1: #{tpu_custom_call.1} parent=0
    #allocation2 [shape = 'u8[32768]{0}', space=vmem, size = 0x8000, scoped, tag = 'input window, operand 2, single buffered']
    #allocation3 [shape = 's32[1]{0}', space=sflag, size = 0x4, scoped, tag = 'scoped memory for tpu_custom_call.1']
    #allocation4 [shape = 's32[1]{0}', space=sflag, size = 0x4, scoped, tag = 'scoped memory for tpu_custom_call.1']
    #allocation5 [shape = 'u8[32768]{0}', space=vmem, size = 0x8000, scoped, tag = 'input window, operand 4, single buffered']
    #allocation6 [shape = 's32[1]{0}', space=sflag, size = 0x4, scoped, tag = 'scoped memory for tpu_custom_call.1']
    #allocation7 [shape = 'u8[32768]{0}', space=vmem, size = 0x8000, scoped, tag = 'input window, operand 6, single buffered']
    #allocation8 [shape = 'u8[2048]{0}', space=vmem, size = 0x800, scoped, tag = 'output window, operand 0, single buffered']
    %12 = vsyncpa [#allocation3], 0
    %13 = vsyncpa [#allocation6], 0
    %14 = vsyncpa [#allocation4], 0
    // Predicated region
    $region2: #{tpu_custom_call.1} parent=1 // pred_check
      _
    $region3: #{tpu_custom_call.1} parent=1 // pred_check_branch
      %16 = sbr.rel (0) target = $region5
    $region4: #{tpu_custom_call.1} parent=1 // pred_region
      _
    $region5: #{tpu_custom_call.1} parent=1 // pred_fallthru
      _
    // Predicated region
    $region6: #{tpu_custom_call.1} parent=1 // pred_check
      _
    $region7: #{tpu_custom_call.1} parent=1 // pred_check_branch
      %18 = sbr.rel (0) target = $region9
    $region8: #{tpu_custom_call.1} parent=1 // pred_region
      _
    $region9: #{tpu_custom_call.1} parent=1 // pred_fallthru
      _
    // Predicated region
    $region10: #{tpu_custom_call.1} parent=1 // pred_check
      _
    $region11: #{tpu_custom_call.1} parent=1 // pred_check_branch
      %20 = sbr.rel (0) target = $region13
    $region12: #{tpu_custom_call.1} parent=1 // pred_region
      %s22 = ssub.s32 1024, 1024
      %23 = vsyncadd [#allocation3], %s22
      %s24 = sshll.u32 [#allocation2], 4
      %s25 = int_to_ptr.vmem [resolvable:$true] %s24
      %30 = dma.hbm_to_vmem [thread:$0]  %s2, 1024, %s25, [#allocation3], 64, 64, 4
    $region13: #{tpu_custom_call.1} parent=1 // pred_fallthru
      _
    // Predicated region
    $region14: #{tpu_custom_call.1} parent=1 // pred_check
      _
    $region15: #{tpu_custom_call.1} parent=1 // pred_check_branch
      %32 = sbr.rel (0) target = $region17
    $region16: #{tpu_custom_call.1} parent=1 // pred_region
      _
    $region17: #{tpu_custom_call.1} parent=1 // pred_fallthru
      _
    // Predicated region
    $region18: #{tpu_custom_call.1} parent=1 // pred_check
      _
    $region19: #{tpu_custom_call.1} parent=1 // pred_check_branch
      %34 = sbr.rel (0) target = $region21
    $region20: #{tpu_custom_call.1} parent=1 // pred_region
      %s36 = ssub.s32 1024, 1024
      %37 = vsyncadd [#allocation6], %s36
      %s38 = sshll.u32 [#allocation5], 4
      %s39 = int_to_ptr.vmem [resolvable:$true] %s38
      %44 = dma.hbm_to_vmem [thread:$0]  %s4, 1024, %s39, [#allocation6], 64, 64, 4
    $region21: #{tpu_custom_call.1} parent=1 // pred_fallthru
      _
    // Predicated region
    $region22: #{tpu_custom_call.1} parent=1 // pred_check
      _
    $region23: #{tpu_custom_call.1} parent=1 // pred_check_branch
      %46 = sbr.rel (0) target = $region25
    $region24: #{tpu_custom_call.1} parent=1 // pred_region
      _
    $region25: #{tpu_custom_call.1} parent=1 // pred_fallthru
      _
    // Predicated region
    $region26: #{tpu_custom_call.1} parent=1 // pred_check
      _
    $region27: #{tpu_custom_call.1} parent=1 // pred_check_branch
      %48 = sbr.rel (0) target = $region29
    $region28: #{tpu_custom_call.1} parent=1 // pred_region
      %s50 = ssub.s32 1024, 1024
      %51 = vsyncadd [#allocation6], %s50
      %s52 = sshll.u32 [#allocation7], 4
      %s53 = int_to_ptr.vmem [resolvable:$true] %s52
      %58 = dma.hbm_to_vmem [thread:$0]  %s6, 1024, %s53, [#allocation6], 64, 64, 4
    $region29: #{tpu_custom_call.1} parent=1 // pred_fallthru
      _
    // Predicated region
    $region30: #{tpu_custom_call.1} parent=1 // pred_check
      _
    $region31: #{tpu_custom_call.1} parent=1 // pred_check_branch
      %60 = sbr.rel (0) target = $region33
    $region32: #{tpu_custom_call.1} parent=1 // pred_region
      %61 = dma.done [#allocation3], 1024
    $region33: #{tpu_custom_call.1} parent=1 // pred_fallthru
      _
    // Predicated region
    $region34: #{tpu_custom_call.1} parent=1 // pred_check
      _
    $region35: #{tpu_custom_call.1} parent=1 // pred_check_branch
      %63 = sbr.rel (0) target = $region37
    $region36: #{tpu_custom_call.1} parent=1 // pred_region
      %64 = dma.done [#allocation6], 1024
    $region37: #{tpu_custom_call.1} parent=1 // pred_fallthru
      _
    // Predicated region
    $region38: #{tpu_custom_call.1} parent=1 // pred_check
      _
    $region39: #{tpu_custom_call.1} parent=1 // pred_check_branch
      %66 = sbr.rel (0) target = $region41
    $region40: #{tpu_custom_call.1} parent=1 // pred_region
      %67 = dma.done [#allocation6], 1024
    $region41: #{tpu_custom_call.1} parent=1 // pred_fallthru
      _
    %v69 = vld [vmem:[%s0] sm:$0xf]
    %v70 = vld [vmem:[%s1] sm:$0xff]
    %v71 = vld [vmem:[#allocation2] sm:$0xf]
    %v72 = vld [vmem:[#allocation2 + $0x4] sm:$0xf]
    %v73 = vld [vmem:[#allocation2 + $0x8] sm:$0xf]
    %v74 = vld [vmem:[#allocation2 + $0xc] sm:$0xf]
    %v75 = vld [vmem:[#allocation2 + $0x10] sm:$0xf]
    %v76 = vld [vmem:[#allocation2 + $0x14] sm:$0xf]
    %v77 = vld [vmem:[#allocation2 + $0x18] sm:$0xf]
    %v78 = vld [vmem:[#allocation2 + $0x1c] sm:$0xf]
    %v79 = vld [vmem:[#allocation2 + $0x20] sm:$0xf]
    %v80 = vld [vmem:[#allocation2 + $0x24] sm:$0xf]
    %v81 = vld [vmem:[#allocation2 + $0x28] sm:$0xf]
    %v82 = vld [vmem:[#allocation2 + $0x2c] sm:$0xf]
    %v83 = vld [vmem:[#allocation2 + $0x30] sm:$0xf]
    %v84 = vld [vmem:[#allocation2 + $0x34] sm:$0xf]
    %v85 = vld [vmem:[#allocation2 + $0x38] sm:$0xf]
    %v86 = vld [vmem:[#allocation2 + $0x3c] sm:$0xf]
    %v87 = vld [vmem:[%s3] sm:$0x1]
    %v89 = vlaneseq
    %v90 = vshrl.u32 %v89, 7
    %v91 = vsub.s32 0, %v90
    %v92 = vrot.slane %v87, %v91
    %v110 = vunpack.c.l.b16 %v71
    %v111 = vunpack.c.l.b16 %v72
    %v112 = vunpack.c.l.b16 %v73
    %v113 = vunpack.c.l.b16 %v74
    %v114 = vunpack.c.l.b16 %v75
    %v115 = vunpack.c.l.b16 %v76
    %v116 = vunpack.c.l.b16 %v77
    %v117 = vunpack.c.l.b16 %v78
    %v118 = vunpack.c.l.b16 %v79
    %v119 = vunpack.c.l.b16 %v80
    %v120 = vunpack.c.l.b16 %v81
    %v121 = vunpack.c.l.b16 %v82
    %v122 = vunpack.c.l.b16 %v83
    %v123 = vunpack.c.l.b16 %v84
    %v124 = vunpack.c.l.b16 %v85
    %v125 = vunpack.c.l.b16 %v86
    %v126 = vpack.c.b16 %v111, %v110
    %v127 = vpack.c.b16 %v113, %v112
    %v128 = vpack.c.b16 %v115, %v114
    %v129 = vpack.c.b16 %v117, %v116
    %v130 = vpack.c.b16 %v119, %v118
    %v131 = vpack.c.b16 %v121, %v120
    %v132 = vpack.c.b16 %v123, %v122
    %v133 = vpack.c.b16 %v125, %v124
    %142 = vmatprep.subr.bf16.mxu0 0
    %143 = vmatpush1.bf16.msra.mxu0 %v133
    %144 = vmatprep.subr.bf16.mxu0 0
    %145 = vmatpush1.bf16.msra.mxu0 %v132
    %146 = vmatprep.subr.bf16.mxu0 0
    %147 = vmatpush1.bf16.msra.mxu0 %v131
    %148 = vmatprep.subr.bf16.mxu0 0
    %149 = vmatpush1.bf16.msra.mxu0 %v130
    %150 = vmatprep.subr.bf16.mxu0 0
    %151 = vmatpush1.bf16.msra.mxu0 %v129
    %152 = vmatprep.subr.bf16.mxu0 0
    %153 = vmatpush1.bf16.msra.mxu0 %v128
    %154 = vmatprep.subr.bf16.mxu0 0
    %155 = vmatpush1.bf16.msra.mxu0 %v127
    %156 = vmatprep.subr.bf16.mxu0 0
    %157 = vmatpush1.bf16.msra.mxu0 %v126
    %158 = vmatprep.subr.bf16.mxu0 0
    %159 = vmatpush2.bf16.msra.mxu0 0
    %160 = vmatprep.subr.bf16.mxu0 0
    %161 = vmatpush2.bf16.msra.mxu0 0
    %162 = vmatprep.subr.bf16.mxu0 0
    %163 = vmatpush2.bf16.msra.mxu0 0
    %164 = vmatprep.subr.bf16.mxu0 0
    %165 = vmatpush2.bf16.msra.mxu0 0
    %166 = vmatprep.subr.bf16.mxu0 0
    %167 = vmatpush2.bf16.msra.mxu0 0
    %168 = vmatprep.subr.bf16.mxu0 0
    %169 = vmatpush2.bf16.msra.mxu0 0
    %170 = vmatprep.subr.bf16.mxu0 0
    %171 = vmatpush2.bf16.msra.mxu0 0
    %172 = vmatprep.subr.bf16.mxu0 0
    %173 = vmatpush2.bf16.msra.mxu0 0
    %174 = vmatprep.mubr.bf16.mxu0 0
    %175 = vmatmul.mubr.bf16.gmra.mxu0 %v69
    %v176 = vpop.f32.mrf.mxu0
    %v177 = vadd.f32 %v92, %v176
    %v178 = vpop.f32.mrf.mxu0
    %v179 = vpop.f32.mrf.mxu0
    %v180 = vpop.f32.mrf.mxu0
    %181 = vdwg.mxu0
    %v182 = vmax.f32 %v177, 0.0
    %v183 = vld [vmem:[#allocation5] sm:$0xf]
    %v184 = vld [vmem:[#allocation5 + $0x4] sm:$0xf]
    %v185 = vld [vmem:[#allocation5 + $0x8] sm:$0xf]
    %v186 = vld [vmem:[#allocation5 + $0xc] sm:$0xf]
    %v187 = vld [vmem:[#allocation5 + $0x10] sm:$0xf]
    %v188 = vld [vmem:[#allocation5 + $0x14] sm:$0xf]
    %v189 = vld [vmem:[#allocation5 + $0x18] sm:$0xf]
    %v190 = vld [vmem:[#allocation5 + $0x1c] sm:$0xf]
    %v191 = vld [vmem:[#allocation5 + $0x20] sm:$0xf]
    %v192 = vld [vmem:[#allocation5 + $0x24] sm:$0xf]
    %v193 = vld [vmem:[#allocation5 + $0x28] sm:$0xf]
    %v194 = vld [vmem:[#allocation5 + $0x2c] sm:$0xf]
    %v195 = vld [vmem:[#allocation5 + $0x30] sm:$0xf]
    %v196 = vld [vmem:[#allocation5 + $0x34] sm:$0xf]
    %v197 = vld [vmem:[#allocation5 + $0x38] sm:$0xf]
    %v198 = vld [vmem:[#allocation5 + $0x3c] sm:$0xf]
    %v199 = vld [vmem:[%s5] sm:$0x1]
    %v201 = vlaneseq
    %v202 = vshrl.u32 %v201, 7
    %v203 = vsub.s32 0, %v202
    %v204 = vrot.slane %v199, %v203
    %v222 = vunpack.c.l.b16 %v183
    %v223 = vunpack.c.l.b16 %v184
    %v224 = vunpack.c.l.b16 %v185
    %v225 = vunpack.c.l.b16 %v186
    %v226 = vunpack.c.l.b16 %v187
    %v227 = vunpack.c.l.b16 %v188
    %v228 = vunpack.c.l.b16 %v189
    %v229 = vunpack.c.l.b16 %v190
    %v230 = vunpack.c.l.b16 %v191
    %v231 = vunpack.c.l.b16 %v192
    %v232 = vunpack.c.l.b16 %v193
    %v233 = vunpack.c.l.b16 %v194
    %v234 = vunpack.c.l.b16 %v195
    %v235 = vunpack.c.l.b16 %v196
    %v236 = vunpack.c.l.b16 %v197
    %v237 = vunpack.c.l.b16 %v198
    %v238 = vpack.c.b16 %v223, %v222
    %v239 = vpack.c.b16 %v225, %v224
    %v240 = vpack.c.b16 %v227, %v226
    %v241 = vpack.c.b16 %v229, %v228
    %v242 = vpack.c.b16 %v231, %v230
    %v243 = vpack.c.b16 %v233, %v232
    %v244 = vpack.c.b16 %v235, %v234
    %v245 = vpack.c.b16 %v237, %v236
    %254 = vmatprep.subr.bf16.mxu0 0
    %255 = vmatpush1.bf16.msra.mxu0 %v245
    %256 = vmatprep.subr.bf16.mxu0 0
    %257 = vmatpush1.bf16.msra.mxu0 %v244
    %258 = vmatprep.subr.bf16.mxu0 0
    %259 = vmatpush1.bf16.msra.mxu0 %v243
    %260 = vmatprep.subr.bf16.mxu0 0
    %261 = vmatpush1.bf16.msra.mxu0 %v242
    %262 = vmatprep.subr.bf16.mxu0 0
    %263 = vmatpush1.bf16.msra.mxu0 %v241
    %264 = vmatprep.subr.bf16.mxu0 0
    %265 = vmatpush1.bf16.msra.mxu0 %v240
    %266 = vmatprep.subr.bf16.mxu0 0
    %267 = vmatpush1.bf16.msra.mxu0 %v239
    %268 = vmatprep.subr.bf16.mxu0 0
    %269 = vmatpush1.bf16.msra.mxu0 %v238
    %270 = vmatprep.subr.bf16.mxu0 0
    %271 = vmatpush2.bf16.msra.mxu0 0
    %272 = vmatprep.subr.bf16.mxu0 0
    %273 = vmatpush2.bf16.msra.mxu0 0
    %274 = vmatprep.subr.bf16.mxu0 0
    %275 = vmatpush2.bf16.msra.mxu0 0
    %276 = vmatprep.subr.bf16.mxu0 0
    %277 = vmatpush2.bf16.msra.mxu0 0
    %278 = vmatprep.subr.bf16.mxu0 0
    %279 = vmatpush2.bf16.msra.mxu0 0
    %280 = vmatprep.subr.bf16.mxu0 0
    %281 = vmatpush2.bf16.msra.mxu0 0
    %282 = vmatprep.subr.bf16.mxu0 0
    %283 = vmatpush2.bf16.msra.mxu0 0
    %284 = vmatprep.subr.bf16.mxu0 0
    %285 = vmatpush2.bf16.msra.mxu0 0
    %286 = vmatprep.mubr.bf16.mxu0 0
    %287 = vmatmul.mubr.bf16.gmra.mxu0 %v69
    %v288 = vpop.f32.mrf.mxu0
    %v289 = vadd.f32 %v204, %v288
    %v290 = vpop.f32.mrf.mxu0
    %v291 = vpop.f32.mrf.mxu0
    %v292 = vpop.f32.mrf.mxu0
    %293 = vdwg.mxu0
    %v294 = vmax.f32 %v289, 0.0
    %vm295 = vcmp.gt.f32.partialorder %v70, 0.0
    %v296 = vsel %vm295, 1, 0
    %297 = vset.pattern.permute.xlu0 0
    %298 = vperm.xlu0 %297, %v296
    %v299 = vpop.permute.xlu0 %298
    %vm300 = vcmp.eq.s32.totalorder %v299, 1
    %v301 = vsel %vm300, %v182, %v294
    %v302 = vpack.c.bf16 %v301, %v301
    %v303 = vld [vmem:[#allocation7] sm:$0xf]
    %v304 = vld [vmem:[#allocation7 + $0x4] sm:$0xf]
    %v305 = vld [vmem:[#allocation7 + $0x8] sm:$0xf]
    %v306 = vld [vmem:[#allocation7 + $0xc] sm:$0xf]
    %v307 = vld [vmem:[#allocation7 + $0x10] sm:$0xf]
    %v308 = vld [vmem:[#allocation7 + $0x14] sm:$0xf]
    %v309 = vld [vmem:[#allocation7 + $0x18] sm:$0xf]
    %v310 = vld [vmem:[#allocation7 + $0x1c] sm:$0xf]
    %v311 = vld [vmem:[#allocation7 + $0x20] sm:$0xf]
    %v312 = vld [vmem:[#allocation7 + $0x24] sm:$0xf]
    %v313 = vld [vmem:[#allocation7 + $0x28] sm:$0xf]
    %v314 = vld [vmem:[#allocation7 + $0x2c] sm:$0xf]
    %v315 = vld [vmem:[#allocation7 + $0x30] sm:$0xf]
    %v316 = vld [vmem:[#allocation7 + $0x34] sm:$0xf]
    %v317 = vld [vmem:[#allocation7 + $0x38] sm:$0xf]
    %v318 = vld [vmem:[#allocation7 + $0x3c] sm:$0xf]
    %v335 = vunpack.c.l.b16 %v303
    %v336 = vunpack.c.l.b16 %v304
    %v337 = vunpack.c.l.b16 %v305
    %v338 = vunpack.c.l.b16 %v306
    %v339 = vunpack.c.l.b16 %v307
    %v340 = vunpack.c.l.b16 %v308
    %v341 = vunpack.c.l.b16 %v309
    %v342 = vunpack.c.l.b16 %v310
    %v343 = vunpack.c.l.b16 %v311
    %v344 = vunpack.c.l.b16 %v312
    %v345 = vunpack.c.l.b16 %v313
    %v346 = vunpack.c.l.b16 %v314
    %v347 = vunpack.c.l.b16 %v315
    %v348 = vunpack.c.l.b16 %v316
    %v349 = vunpack.c.l.b16 %v317
    %v350 = vunpack.c.l.b16 %v318
    %v351 = vpack.c.b16 %v336, %v335
    %v352 = vpack.c.b16 %v338, %v337
    %v353 = vpack.c.b16 %v340, %v339
    %v354 = vpack.c.b16 %v342, %v341
    %v355 = vpack.c.b16 %v344, %v343
    %v356 = vpack.c.b16 %v346, %v345
    %v357 = vpack.c.b16 %v348, %v347
    %v358 = vpack.c.b16 %v350, %v349
    %367 = vmatprep.subr.bf16.mxu0 0
    %368 = vmatpush1.bf16.msra.mxu0 %v358
    %369 = vmatprep.subr.bf16.mxu0 0
    %370 = vmatpush1.bf16.msra.mxu0 %v357
    %371 = vmatprep.subr.bf16.mxu0 0
    %372 = vmatpush1.bf16.msra.mxu0 %v356
    %373 = vmatprep.subr.bf16.mxu0 0
    %374 = vmatpush1.bf16.msra.mxu0 %v355
    %375 = vmatprep.subr.bf16.mxu0 0
    %376 = vmatpush1.bf16.msra.mxu0 %v354
    %377 = vmatprep.subr.bf16.mxu0 0
    %378 = vmatpush1.bf16.msra.mxu0 %v353
    %379 = vmatprep.subr.bf16.mxu0 0
    %380 = vmatpush1.bf16.msra.mxu0 %v352
    %381 = vmatprep.subr.bf16.mxu0 0
    %382 = vmatpush1.bf16.msra.mxu0 %v351
    %383 = vmatprep.subr.bf16.mxu0 0
    %384 = vmatpush2.bf16.msra.mxu0 0
    %385 = vmatprep.subr.bf16.mxu0 0
    %386 = vmatpush2.bf16.msra.mxu0 0
    %387 = vmatprep.subr.bf16.mxu0 0
    %388 = vmatpush2.bf16.msra.mxu0 0
    %389 = vmatprep.subr.bf16.mxu0 0
    %390 = vmatpush2.bf16.msra.mxu0 0
    %391 = vmatprep.subr.bf16.mxu0 0
    %392 = vmatpush2.bf16.msra.mxu0 0
    %393 = vmatprep.subr.bf16.mxu0 0
    %394 = vmatpush2.bf16.msra.mxu0 0
    %395 = vmatprep.subr.bf16.mxu0 0
    %396 = vmatpush2.bf16.msra.mxu0 0
    %397 = vmatprep.subr.bf16.mxu0 0
    %398 = vmatpush2.bf16.msra.mxu0 0
    %399 = vmatprep.mubr.bf16.mxu0 0
    %400 = vmatmul.mubr.bf16.gmra.mxu0 %v302
    %v401 = vpop.f32.mrf.mxu0
    %v402 = vadd.f32 0.0, %v401
    %v403 = vpop.f32.mrf.mxu0
    %v404 = vpop.f32.mrf.mxu0
    %v405 = vpop.f32.mrf.mxu0
    %406 = vdwg.mxu0
    %v407 = vpack.c.bf16 %v402, %v402
    %408 = vst [vmem:[#allocation8] sm:$0xf] %v407
    // Predicated region
    $region42: #{tpu_custom_call.1} parent=1 // pred_check
      _
    $region43: #{tpu_custom_call.1} parent=1 // pred_check_branch
      %410 = sbr.rel (0) target = $region45
    $region44: #{tpu_custom_call.1} parent=1 // pred_region
      %s412 = ssub.s32 64, 64
      %413 = vsyncadd [#allocation4], %s412
      %s415 = sshll.u32 [#allocation8], 4
      %s416 = int_to_ptr.vmem [resolvable:$true] %s415
      %418 = dma.vmem_to_hbm [thread:$0]  %s416, 64, %s7, [#allocation4]
    $region45: #{tpu_custom_call.1} parent=1 // pred_fallthru
      _
    // Predicated region
    $region46: #{tpu_custom_call.1} parent=1 // pred_check
      _
    $region47: #{tpu_custom_call.1} parent=1 // pred_check_branch
      %420 = sbr.rel (0) target = $region49
    $region48: #{tpu_custom_call.1} parent=1 // pred_region
      %421 = dma.done [#allocation4], 64
    $region49: #{tpu_custom_call.1} parent=1 // pred_fallthru
      _
    %422 = vsyncpa [#allocation3], 1
    %423 = vsyncpa [#allocation6], 1
    %424 = vsyncpa [#allocation4], 1

</llo_original>
